<compile_context>
chip_gen: v7x
topology: tpu7x:2x2x1
jax: 0.10.0
libtpu: 0.0.40
codegen_flags: <defaults>
</compile_context>

<pallas_src>
import functools

import jax
import jax.numpy as jnp
from jax.experimental import pallas as pl
from jax.experimental.pallas import tpu as pltpu


def _round_up(x, m):
    return -(-x // m) * m


def _pick_s_tile(n, c, s, itemsize, s_tile=None, vmem_block_bytes=2 << 20):
    """Largest 128-multiple spatial tile whose (N, C, tile) block fits the budget."""
    s128 = _round_up(s, 128)
    if s_tile is None:
        per_lane = max(1, n * c * itemsize)
        s_tile = max(128, (vmem_block_bytes // per_lane) // 128 * 128)
    else:
        s_tile = max(128, (int(s_tile) // 128) * 128)
    return int(min(s_tile, s128))


# ---------------------------------------------------------------------------
# Pass 1: per-channel sum / sum-of-squares -> sd
# ---------------------------------------------------------------------------
def _stats_kernel(x_ref, sd_ref, acc1_ref, acc2_ref, *,
                  inv_m, eps, s_total, s_tile, ragged):
    j = pl.program_id(0)

    @pl.when(j == 0)
    def _init():
        acc1_ref[...] = jnp.zeros_like(acc1_ref)
        acc2_ref[...] = jnp.zeros_like(acc2_ref)

    x = x_ref[...].astype(jnp.float32)            # (N, C, S_tile)
    n, c, st = x.shape
    if ragged:
        # Mask lanes past the true spatial extent (last tile may read
        # out-of-bounds garbage; jnp.where is NaN-safe).
        lane = jax.lax.broadcasted_iota(jnp.int32, (n, c, st), 2)
        x = jnp.where(j * s_tile + lane < s_total, x, 0.0)
    acc1_ref[...] += jnp.sum(x, axis=(0, 2)).reshape(1, c)
    acc2_ref[...] += jnp.sum(x * x, axis=(0, 2)).reshape(1, c)

    @pl.when(j == pl.num_programs(0) - 1)
    def _finalize():
        mean = acc1_ref[...] * inv_m
        ex2 = acc2_ref[...] * inv_m
        var = ex2 - mean * mean
        sd_ref[...] = jnp.sqrt(jnp.maximum(var, eps))


def _channel_sd(x3, s_tile, m_total, eps):
    n, c, s = x3.shape
    grid = (pl.cdiv(s, s_tile),)
    kernel = functools.partial(
        _stats_kernel,
        inv_m=1.0 / float(m_total),
        eps=float(eps),
        s_total=s,
        s_tile=s_tile,
        ragged=(s % s_tile != 0),
    )
    return pl.pallas_call(
        kernel,
        out_shape=jax.ShapeDtypeStruct((1, c), jnp.float32),
        grid_spec=pltpu.PrefetchScalarGridSpec(
            num_scalar_prefetch=0,
            grid=grid,
            in_specs=[pl.BlockSpec((n, c, s_tile), lambda j: (0, 0, j))],
            out_specs=pl.BlockSpec((1, c), lambda j: (0, 0)),
            scratch_shapes=[pltpu.VMEM((1, c), jnp.float32),
                            pltpu.VMEM((1, c), jnp.float32)],
        ),
        compiler_params=pltpu.CompilerParams(
            # grid axis is the reduction axis (accumulator resident across it)
            dimension_semantics=("arbitrary",),
        ),
        cost_estimate=pl.CostEstimate(
            flops=3 * n * c * s,
            transcendentals=c,
            bytes_accessed=n * c * s * x3.dtype.itemsize + 4 * c,
        ),
    )(x3)


# ---------------------------------------------------------------------------
# Pass 2: out = x * scale[channel]   (lane-dense elementwise, pure VPU)
# ---------------------------------------------------------------------------
def _scale_kernel(x_ref, scale_ref, o_ref):
    # x_ref/o_ref: (N, C, S_tile); scale_ref: (1, C, 1) broadcast over N and lanes
    o_ref[...] = (x_ref[...] * scale_ref[...]).astype(o_ref.dtype)


def _apply_scale(x3, scale, s_tile):
    n, c, s = x3.shape
    grid = (pl.cdiv(s, s_tile),)
    return pl.pallas_call(
        _scale_kernel,
        out_shape=jax.ShapeDtypeStruct((n, c, s), x3.dtype),
        grid_spec=pltpu.PrefetchScalarGridSpec(
            num_scalar_prefetch=0,
            grid=grid,
            in_specs=[pl.BlockSpec((n, c, s_tile), lambda j: (0, 0, j)),
                      pl.BlockSpec((1, c, 1), lambda j: (0, 0, 0))],
            out_specs=pl.BlockSpec((n, c, s_tile), lambda j: (0, 0, j)),
        ),
        compiler_params=pltpu.CompilerParams(
            # independent spatial tiles -> shard across TensorCores (megacore)
            dimension_semantics=("parallel",),
        ),
        cost_estimate=pl.CostEstimate(
            flops=n * c * s,
            transcendentals=0,
            bytes_accessed=2 * n * c * s * x3.dtype.itemsize + 4 * c,
        ),
    )(x3, scale)


# ---------------------------------------------------------------------------
# BF_BN forward
# ---------------------------------------------------------------------------
def bf_bn_forward(x, running_sd, gamma=None, *, training=True,
                  momentum=0.1, eps=1e-5, s_tile=None):
    """x: (N, C, D, H, W); running_sd/gamma: (1, C, 1, 1, 1).

    Returns (out, new_running_sd), matching PyTorch BF_BN.forward (the
    in-place running_sd update is returned functionally).
    """
    n, c, d, h, w = x.shape
    s = d * h * w
    x3 = x.reshape(n, c, s)          # free reshape; NCDHW kept, S on lanes

    s_tile = _pick_s_tile(n, c, s, x.dtype.itemsize, s_tile=s_tile)

    if training:
        sd = _channel_sd(x3, s_tile, m_total=n * s, eps=eps)        # (1, C) f32
        new_running_sd = ((1.0 - momentum) * running_sd
                          + momentum * sd.reshape(1, c, 1, 1, 1)
                          ).astype(running_sd.dtype)
    else:
        sd = running_sd.reshape(1, c).astype(jnp.float32)
        new_running_sd = running_sd

    inv = 1.0 / sd                                  # O(C) scalar work, plain JAX
    if gamma is not None:
        inv = inv * gamma.reshape(1, c).astype(jnp.float32)
    scale = inv.reshape(1, c, 1)

    out3 = _apply_scale(x3, scale, s_tile)
    return out3.reshape(n, c, d, h, w), new_running_sd


if __name__ == "__main__":
    key = jax.random.PRNGKey(0)
    kx, kg, kr = jax.random.split(key, 3)

    N, C, D, H, W = 2, 4, 16, 16, 16
    x = jax.random.normal(kx, (N, C, D, H, W), dtype=jnp.float32) * 2.0 + 0.5
    running_sd = jnp.ones((1, C, 1, 1, 1), dtype=jnp.float32)
    # learnable_sd=True path exercised with a non-trivial gamma
    gamma = jax.random.uniform(kg, (1, C, 1, 1, 1),
                               minval=0.5, maxval=1.5, dtype=jnp.float32)

    # --- training mode (module default): normalize by batch sd, update running_sd
    out, new_rsd = bf_bn_forward(x, running_sd, gamma, training=True)
    out = jax.block_until_ready(out)
    new_rsd = jax.block_until_ready(new_rsd)

    var_ref = jnp.var(x, axis=(0, 2, 3, 4), keepdims=True)          # unbiased=False
    sd_ref = jnp.sqrt(jnp.maximum(var_ref, 1e-5))
    ref_out = x / sd_ref * gamma
    ref_rsd = (1.0 - 0.1) * running_sd + 0.1 * sd_ref

    assert out.shape == x.shape
    assert jnp.allclose(out, ref_out, atol=1e-4, rtol=1e-4)
    assert jnp.allclose(new_rsd, ref_rsd, atol=1e-5, rtol=1e-5)

    # --- eval mode: normalize by running_sd
    out_e, rsd_e = bf_bn_forward(x, new_rsd, gamma, training=False)
    out_e = jax.block_until_ready(out_e)
    ref_e = x / new_rsd * gamma
    assert jnp.allclose(out_e, ref_e, atol=1e-4, rtol=1e-4)
    assert jnp.allclose(rsd_e, new_rsd)

    # --- ragged spatial extent (S = 5*6*7 = 210, not a lane multiple):
    #     exercises the in-kernel masking path (no jnp.pad HBM copy).
    xr = jax.random.normal(kr, (N, C, 5, 6, 7), dtype=jnp.float32) * 1.3 - 0.2
    out_r, _ = bf_bn_forward(xr, running_sd, gamma, training=True)
    out_r = jax.block_until_ready(out_r)
    var_r = jnp.var(xr, axis=(0, 2, 3, 4), keepdims=True)
    ref_r = xr / jnp.sqrt(jnp.maximum(var_r, 1e-5)) * gamma
    assert jnp.allclose(out_r, ref_r, atol=1e-4, rtol=1e-4)

    print("KERNEL_OK")
</pallas_src>

<mosaic_0001>
module attributes {stable_mosaic.version = 11 : i64} {
  func.func @_stats_kernel(%arg0: i32, %arg1: memref<2x4x4096xf32, #tpu.memory_space<vmem>>, %arg2: memref<1x4xf32, #tpu.memory_space<vmem>>, %arg3: memref<1x4xf32, #tpu.memory_space<vmem>>, %arg4: memref<1x4xf32, #tpu.memory_space<vmem>>) attributes {dimension_semantics = [#tpu.dimension_semantics<arbitrary>], iteration_bounds = array<i64: 1>, scalar_prefetch = 0 : i64, scratch_operands = 2 : i64, tpu.core_type = #tpu.core_type<tc>, window_params = [{transform_indices = @transform_0, window_bounds = array<i64: 2, 4, 4096>}, {pipeline_mode = #tpu.pipeline_mode<synchronous>, transform_indices = @transform_1, window_bounds = array<i64: 1, 4>}]} {
    %c0_i32 = arith.constant 0 : i32
    %0 = arith.cmpi eq, %arg0, %c0_i32 : i32
    %1 = arith.extui %0 : i1 to i32
    %c0_i32_0 = arith.constant 0 : i32
    %2 = arith.cmpi ne, %1, %c0_i32_0 : i32
    scf.if %2 {
      %cst_14 = arith.constant 0.000000e+00 : f32
      %18 = vector.broadcast %cst_14 : f32 to vector<1x4xf32>
      %c0_15 = arith.constant 0 : index
      %c0_16 = arith.constant 0 : index
      %19 = vector.load %arg3[%c0_15, %c0_16] : memref<1x4xf32, #tpu.memory_space<vmem>>, vector<1x4xf32>
      tpu.vector_store %arg3[%c0_15, %c0_16], %18 {strides = array<i32>} : memref<1x4xf32, #tpu.memory_space<vmem>>, vector<1x4xf32>,
      %cst_17 = arith.constant 0.000000e+00 : f32
      %20 = vector.broadcast %cst_17 : f32 to vector<1x4xf32>
      %c0_18 = arith.constant 0 : index
      %c0_19 = arith.constant 0 : index
      %21 = vector.load %arg4[%c0_18, %c0_19] : memref<1x4xf32, #tpu.memory_space<vmem>>, vector<1x4xf32>
      tpu.vector_store %arg4[%c0_18, %c0_19], %20 {strides = array<i32>} : memref<1x4xf32, #tpu.memory_space<vmem>>, vector<1x4xf32>,
    } else {
    }
    %c0 = arith.constant 0 : index
    %c0_1 = arith.constant 0 : index
    %c0_2 = arith.constant 0 : index
    %3 = vector.load %arg1[%c0, %c0_1, %c0_2] : memref<2x4x4096xf32, #tpu.memory_space<vmem>>, vector<2x4x4096xf32>
    %c0_3 = arith.constant 0 : index
    %c0_4 = arith.constant 0 : index
    %4 = vector.load %arg3[%c0_3, %c0_4] : memref<1x4xf32, #tpu.memory_space<vmem>>, vector<1x4xf32>
    %cst = arith.constant dense<0.000000e+00> : vector<4xf32>
    %5 = vector.multi_reduction <add>, %3, %cst [0, 2] : vector<2x4x4096xf32> to vector<4xf32>
    %6 = vector.shape_cast %5 : vector<4xf32> to vector<1x4xf32>
    %7 = arith.addf %4, %6 : vector<1x4xf32>
    %c0_5 = arith.constant 0 : index
    %c0_6 = arith.constant 0 : index
    %8 = vector.load %arg3[%c0_5, %c0_6] : memref<1x4xf32, #tpu.memory_space<vmem>>, vector<1x4xf32>
    tpu.vector_store %arg3[%c0_5, %c0_6], %7 {strides = array<i32>} : memref<1x4xf32, #tpu.memory_space<vmem>>, vector<1x4xf32>,
    %c0_7 = arith.constant 0 : index
    %c0_8 = arith.constant 0 : index
    %9 = vector.load %arg4[%c0_7, %c0_8] : memref<1x4xf32, #tpu.memory_space<vmem>>, vector<1x4xf32>
    %10 = arith.mulf %3, %3 : vector<2x4x4096xf32>
    %cst_9 = arith.constant dense<0.000000e+00> : vector<4xf32>
    %11 = vector.multi_reduction <add>, %10, %cst_9 [0, 2] : vector<2x4x4096xf32> to vector<4xf32>
    %12 = vector.shape_cast %11 : vector<4xf32> to vector<1x4xf32>
    %13 = arith.addf %9, %12 : vector<1x4xf32>
    %c0_10 = arith.constant 0 : index
    %c0_11 = arith.constant 0 : index
    %14 = vector.load %arg4[%c0_10, %c0_11] : memref<1x4xf32, #tpu.memory_space<vmem>>, vector<1x4xf32>
    tpu.vector_store %arg4[%c0_10, %c0_11], %13 {strides = array<i32>} : memref<1x4xf32, #tpu.memory_space<vmem>>, vector<1x4xf32>,
    %c0_i32_12 = arith.constant 0 : i32
    %15 = arith.cmpi eq, %arg0, %c0_i32_12 : i32
    %16 = arith.extui %15 : i1 to i32
    %c0_i32_13 = arith.constant 0 : i32
    %17 = arith.cmpi ne, %16, %c0_i32_13 : i32
    scf.if %17 {
      %c0_14 = arith.constant 0 : index
      %c0_15 = arith.constant 0 : index
      %18 = vector.load %arg3[%c0_14, %c0_15] : memref<1x4xf32, #tpu.memory_space<vmem>>, vector<1x4xf32>
      %cst_16 = arith.constant 1.22070313E-4 : f32
      %19 = vector.broadcast %cst_16 : f32 to vector<1x4xf32>
      %20 = arith.mulf %18, %19 : vector<1x4xf32>
      %c0_17 = arith.constant 0 : index
      %c0_18 = arith.constant 0 : index
      %21 = vector.load %arg4[%c0_17, %c0_18] : memref<1x4xf32, #tpu.memory_space<vmem>>, vector<1x4xf32>
      %cst_19 = arith.constant 1.22070313E-4 : f32
      %22 = vector.broadcast %cst_19 : f32 to vector<1x4xf32>
      %23 = arith.mulf %21, %22 : vector<1x4xf32>
      %24 = arith.mulf %20, %20 : vector<1x4xf32>
      %25 = arith.subf %23, %24 : vector<1x4xf32>
      %cst_20 = arith.constant 9.99999974E-6 : f32
      %26 = vector.broadcast %cst_20 : f32 to vector<1x4xf32>
      %27 = arith.maximumf %25, %26 : vector<1x4xf32>
      %28 = math.sqrt %27 : vector<1x4xf32>
      %c0_21 = arith.constant 0 : index
      %c0_22 = arith.constant 0 : index
      %29 = vector.load %arg2[%c0_21, %c0_22] : memref<1x4xf32, #tpu.memory_space<vmem>>, vector<1x4xf32>
      tpu.vector_store %arg2[%c0_21, %c0_22], %28 {strides = array<i32>} : memref<1x4xf32, #tpu.memory_space<vmem>>, vector<1x4xf32>,
    } else {
    }
    return
  }
  func.func @transform_0(%arg0: i32) -> (i32, i32, i32) {
    %c0_i32 = arith.constant 0 : i32
    %c0_i32_0 = arith.constant 0 : i32
    %c0_i32_1 = arith.constant 0 : i32
    return %c0_i32, %c0_i32_0, %arg0 : i32, i32, i32
  }
  func.func @transform_1(%arg0: i32) -> (i32, i32) {
    %c0_i32 = arith.constant 0 : i32
    %c0_i32_0 = arith.constant 0 : i32
    %c0_i32_1 = arith.constant 0 : i32
    return %c0_i32, %c0_i32_0 : i32, i32
  }
}

</mosaic_0001>

<llo_original>
// kernel: tpu_custom_call.1
$region0: #{tpu_custom_call.1}
  #allocation0 [shape = 'u32[]', space=smem, size = 0x4, offset = 0x4, fixed_abs, tag = 'smem constant byte address 0x4 - core index']
  #allocation1 [shape = 'u32[144,128]{1,0:T(1,128)}', space=vmem, size = 0x12000, scoped, tag = 'internal scratch']
  #allocation2 [shape = 'f32[1,4]{1,0:T(1,128)}', space=vmem, size = 0x200, scoped, tag = 'scratch operand']
  #allocation3 [shape = 'f32[1,4]{1,0:T(1,128)}', space=vmem, size = 0x200, scoped, tag = 'scratch operand']
  %s0 = inlined_call_operand.hbm [shape: f32[2,4,4096], index: 0, kind: input, shape index: {}]
  %s1 = inlined_call_operand.hbm [shape: f32[1,4], index: 1, kind: output, shape index: {}]
  %s2 = sld [smem:[#allocation0]]
  $region26: #{tpu_custom_call.1} parent=0
    _
  %s4 = ssub.s32 1, %s2
  %s5 = scalar_select 0, %s4, %s2
  $region1: #{tpu_custom_call.1} parent=0
    #allocation4 [shape = 'u8[131072]{0}', space=vmem, size = 0x20000, scoped, tag = 'input window, operand 0, single buffered']
    #allocation5 [shape = 's32[1]{0}', space=sflag, size = 0x4, scoped, tag = 'scoped memory for tpu_custom_call.1']
    #allocation6 [shape = 's32[1]{0}', space=sflag, size = 0x4, scoped, tag = 'scoped memory for tpu_custom_call.1']
    #allocation7 [shape = 'u8[512]{0}', space=vmem, size = 0x400, scoped, tag = 'output window, operand 0, single buffered']
    %6 = vsyncpa [#allocation5], 0
    %7 = vsyncpa [#allocation6], 0
    // Predicated region
    $region2: #{tpu_custom_call.1} parent=1 // pred_check
      _
    $region3: #{tpu_custom_call.1} parent=1 // pred_check_branch
      %9 = sbr.rel (0) target = $region5
    $region4: #{tpu_custom_call.1} parent=1 // pred_region
      %s11 = ssub.s32 4096, 4096
      %12 = vsyncadd [#allocation5], %s11
      %s13 = sshll.u32 [#allocation4], 4
      %s14 = int_to_ptr.vmem [resolvable:$true] %s13
      %19 = dma.hbm_to_vmem [thread:$0]  %s0, 4096, %s14, [#allocation5], 2048, 2048, 128
    $region5: #{tpu_custom_call.1} parent=1 // pred_fallthru
      _
    // Predicated region
    $region6: #{tpu_custom_call.1} parent=1 // pred_check
      _
    $region7: #{tpu_custom_call.1} parent=1 // pred_check_branch
      %21 = sbr.rel (0) target = $region9
    $region8: #{tpu_custom_call.1} parent=1 // pred_region
      %22 = dma.done [#allocation5], 4096
    $region9: #{tpu_custom_call.1} parent=1 // pred_fallthru
      _
    %p23 = scmp.eq.s32.totalorder 0, 0
    // Predicated region
    $region10: #{tpu_custom_call.1} parent=1 // pred_check
      %p24 = pneg %p23
    $region11: #{tpu_custom_call.1} parent=1 // pred_check_branch
      %26 = sbr.rel (%p24) target = $region13
    $region12: #{tpu_custom_call.1} parent=1 // pred_region
      %vm27 = vcmask 24576
      %28 = vst.msk [vmem:[#allocation2] sm:$0x1] %vm27, 0.0
      %29 = vst.msk [vmem:[#allocation3] sm:$0x1] %vm27, 0.0
    $region13: #{tpu_custom_call.1} parent=1 // pred_fallthru
      _
    %v30 = vld [vmem:[#allocation4] sm:$0xff]
    %v31 = vld [vmem:[#allocation4 + $0x8] sm:$0xff]
    %v32 = vld [vmem:[#allocation4 + $0x10] sm:$0xff]
    %v33 = vld [vmem:[#allocation4 + $0x18] sm:$0xff]
    %v34 = vld [vmem:[#allocation4 + $0x20] sm:$0xff]
    %v35 = vld [vmem:[#allocation4 + $0x28] sm:$0xff]
    %v36 = vld [vmem:[#allocation4 + $0x30] sm:$0xff]
    %v37 = vld [vmem:[#allocation4 + $0x38] sm:$0xff]
    %v38 = vld [vmem:[#allocation4 + $0x40] sm:$0xff]
    %v39 = vld [vmem:[#allocation4 + $0x48] sm:$0xff]
    %v40 = vld [vmem:[#allocation4 + $0x50] sm:$0xff]
    %v41 = vld [vmem:[#allocation4 + $0x58] sm:$0xff]
    %v42 = vld [vmem:[#allocation4 + $0x60] sm:$0xff]
    %v43 = vld [vmem:[#allocation4 + $0x68] sm:$0xff]
    %v44 = vld [vmem:[#allocation4 + $0x70] sm:$0xff]
    %v45 = vld [vmem:[#allocation4 + $0x78] sm:$0xff]
    %v46 = vld [vmem:[#allocation4 + $0x80] sm:$0xff]
    %v47 = vld [vmem:[#allocation4 + $0x88] sm:$0xff]
    %v48 = vld [vmem:[#allocation4 + $0x90] sm:$0xff]
    %v49 = vld [vmem:[#allocation4 + $0x98] sm:$0xff]
    %v50 = vld [vmem:[#allocation4 + $0xa0] sm:$0xff]
    %v51 = vld [vmem:[#allocation4 + $0xa8] sm:$0xff]
    %v52 = vld [vmem:[#allocation4 + $0xb0] sm:$0xff]
    %v53 = vld [vmem:[#allocation4 + $0xb8] sm:$0xff]
    %v54 = vld [vmem:[#allocation4 + $0xc0] sm:$0xff]
    %v55 = vld [vmem:[#allocation4 + $0xc8] sm:$0xff]
    %v56 = vld [vmem:[#allocation4 + $0xd0] sm:$0xff]
    %v57 = vld [vmem:[#allocation4 + $0xd8] sm:$0xff]
    %v58 = vld [vmem:[#allocation4 + $0xe0] sm:$0xff]
    %v59 = vld [vmem:[#allocation4 + $0xe8] sm:$0xff]
    %v60 = vld [vmem:[#allocation4 + $0xf0] sm:$0xff]
    %v61 = vld [vmem:[#allocation4 + $0xf8] sm:$0xff]
    %v62 = vld [vmem:[#allocation2] sm:$0x1]
    %v95 = vcombine.high %v30, %v30
    %v96 = vcombine.high %v31, %v31
    %v97 = vcombine.high %v32, %v32
    %v98 = vcombine.high %v33, %v33
    %v99 = vcombine.high %v34, %v34
    %v100 = vcombine.high %v35, %v35
    %v101 = vcombine.high %v36, %v36
    %v102 = vcombine.high %v37, %v37
    %v103 = vcombine.high %v38, %v38
    %v104 = vcombine.high %v39, %v39
    %v105 = vcombine.high %v40, %v40
    %v106 = vcombine.high %v41, %v41
    %v107 = vcombine.high %v42, %v42
    %v108 = vcombine.high %v43, %v43
    %v109 = vcombine.high %v44, %v44
    %v110 = vcombine.high %v45, %v45
    %v111 = vcombine.high %v46, %v46
    %v112 = vcombine.high %v47, %v47
    %v113 = vcombine.high %v48, %v48
    %v114 = vcombine.high %v49, %v49
    %v115 = vcombine.high %v50, %v50
    %v116 = vcombine.high %v51, %v51
    %v117 = vcombine.high %v52, %v52
    %v118 = vcombine.high %v53, %v53
    %v119 = vcombine.high %v54, %v54
    %v120 = vcombine.high %v55, %v55
    %v121 = vcombine.high %v56, %v56
    %v122 = vcombine.high %v57, %v57
    %v123 = vcombine.high %v58, %v58
    %v124 = vcombine.high %v59, %v59
    %v125 = vcombine.high %v60, %v60
    %v126 = vcombine.high %v61, %v61
    %vm159 = vcmask 1043456
    %v160 = vsel %vm159, %v30, 0.0
    %v161 = vsel %vm159, %v95, 0.0
    %v162 = vadd.f32 %v160, %v161
    %v163 = vsel %vm159, %v31, 0.0
    %v164 = vadd.f32 %v162, %v163
    %v165 = vsel %vm159, %v96, 0.0
    %v166 = vadd.f32 %v164, %v165
    %v167 = vsel %vm159, %v32, 0.0
    %v168 = vadd.f32 %v166, %v167
    %v169 = vsel %vm159, %v97, 0.0
    %v170 = vadd.f32 %v168, %v169
    %v171 = vsel %vm159, %v33, 0.0
    %v172 = vadd.f32 %v170, %v171
    %v173 = vsel %vm159, %v98, 0.0
    %v174 = vadd.f32 %v172, %v173
    %v175 = vsel %vm159, %v34, 0.0
    %v176 = vadd.f32 %v174, %v175
    %v177 = vsel %vm159, %v99, 0.0
    %v178 = vadd.f32 %v176, %v177
    %v179 = vsel %vm159, %v35, 0.0
    %v180 = vadd.f32 %v178, %v179
    %v181 = vsel %vm159, %v100, 0.0
    %v182 = vadd.f32 %v180, %v181
    %v183 = vsel %vm159, %v36, 0.0
    %v184 = vadd.f32 %v182, %v183
    %v185 = vsel %vm159, %v101, 0.0
    %v186 = vadd.f32 %v184, %v185
    %v187 = vsel %vm159, %v37, 0.0
    %v188 = vadd.f32 %v186, %v187
    %v189 = vsel %vm159, %v102, 0.0
    %v190 = vadd.f32 %v188, %v189
    %v191 = vsel %vm159, %v38, 0.0
    %v192 = vadd.f32 %v190, %v191
    %v193 = vsel %vm159, %v103, 0.0
    %v194 = vadd.f32 %v192, %v193
    %v195 = vsel %vm159, %v39, 0.0
    %v196 = vadd.f32 %v194, %v195
    %v197 = vsel %vm159, %v104, 0.0
    %v198 = vadd.f32 %v196, %v197
    %v199 = vsel %vm159, %v40, 0.0
    %v200 = vadd.f32 %v198, %v199
    %v201 = vsel %vm159, %v105, 0.0
    %v202 = vadd.f32 %v200, %v201
    %v203 = vsel %vm159, %v41, 0.0
    %v204 = vadd.f32 %v202, %v203
    %v205 = vsel %vm159, %v106, 0.0
    %v206 = vadd.f32 %v204, %v205
    %v207 = vsel %vm159, %v42, 0.0
    %v208 = vadd.f32 %v206, %v207
    %v209 = vsel %vm159, %v107, 0.0
    %v210 = vadd.f32 %v208, %v209
    %v211 = vsel %vm159, %v43, 0.0
    %v212 = vadd.f32 %v210, %v211
    %v213 = vsel %vm159, %v108, 0.0
    %v214 = vadd.f32 %v212, %v213
    %v215 = vsel %vm159, %v44, 0.0
    %v216 = vadd.f32 %v214, %v215
    %v217 = vsel %vm159, %v109, 0.0
    %v218 = vadd.f32 %v216, %v217
    %v219 = vsel %vm159, %v45, 0.0
    %v220 = vadd.f32 %v218, %v219
    %v221 = vsel %vm159, %v110, 0.0
    %v222 = vadd.f32 %v220, %v221
    %v223 = vsel %vm159, %v46, 0.0
    %v224 = vadd.f32 %v222, %v223
    %v225 = vsel %vm159, %v111, 0.0
    %v226 = vadd.f32 %v224, %v225
    %v227 = vsel %vm159, %v47, 0.0
    %v228 = vadd.f32 %v226, %v227
    %v229 = vsel %vm159, %v112, 0.0
    %v230 = vadd.f32 %v228, %v229
    %v231 = vsel %vm159, %v48, 0.0
    %v232 = vadd.f32 %v230, %v231
    %v233 = vsel %vm159, %v113, 0.0
    %v234 = vadd.f32 %v232, %v233
    %v235 = vsel %vm159, %v49, 0.0
    %v236 = vadd.f32 %v234, %v235
    %v237 = vsel %vm159, %v114, 0.0
    %v238 = vadd.f32 %v236, %v237
    %v239 = vsel %vm159, %v50, 0.0
    %v240 = vadd.f32 %v238, %v239
    %v241 = vsel %vm159, %v115, 0.0
    %v242 = vadd.f32 %v240, %v241
    %v243 = vsel %vm159, %v51, 0.0
    %v244 = vadd.f32 %v242, %v243
    %v245 = vsel %vm159, %v116, 0.0
    %v246 = vadd.f32 %v244, %v245
    %v247 = vsel %vm159, %v52, 0.0
    %v248 = vadd.f32 %v246, %v247
    %v249 = vsel %vm159, %v117, 0.0
    %v250 = vadd.f32 %v248, %v249
    %v251 = vsel %vm159, %v53, 0.0
    %v252 = vadd.f32 %v250, %v251
    %v253 = vsel %vm159, %v118, 0.0
    %v254 = vadd.f32 %v252, %v253
    %v255 = vsel %vm159, %v54, 0.0
    %v256 = vadd.f32 %v254, %v255
    %v257 = vsel %vm159, %v119, 0.0
    %v258 = vadd.f32 %v256, %v257
    %v259 = vsel %vm159, %v55, 0.0
    %v260 = vadd.f32 %v258, %v259
    %v261 = vsel %vm159, %v120, 0.0
    %v262 = vadd.f32 %v260, %v261
    %v263 = vsel %vm159, %v56, 0.0
    %v264 = vadd.f32 %v262, %v263
    %v265 = vsel %vm159, %v121, 0.0
    %v266 = vadd.f32 %v264, %v265
    %v267 = vsel %vm159, %v57, 0.0
    %v268 = vadd.f32 %v266, %v267
    %v269 = vsel %vm159, %v122, 0.0
    %v270 = vadd.f32 %v268, %v269
    %v271 = vsel %vm159, %v58, 0.0
    %v272 = vadd.f32 %v270, %v271
    %v273 = vsel %vm159, %v123, 0.0
    %v274 = vadd.f32 %v272, %v273
    %v275 = vsel %vm159, %v59, 0.0
    %v276 = vadd.f32 %v274, %v275
    %v277 = vsel %vm159, %v124, 0.0
    %v278 = vadd.f32 %v276, %v277
    %v279 = vsel %vm159, %v60, 0.0
    %v280 = vadd.f32 %v278, %v279
    %v281 = vsel %vm159, %v125, 0.0
    %v282 = vadd.f32 %v280, %v281
    %v283 = vsel %vm159, %v61, 0.0
    %v284 = vadd.f32 %v282, %v283
    %v285 = vsel %vm159, %v126, 0.0
    %v286 = vadd.f32 %v284, %v285
    %287 = vadd.xlane.f32.xlu0 %v286
    %v288 = vpop.xlane.xlu0 %287
    %v290 = vlaneseq
    %v291 = vshrl.u32 %v290, 7
    %v292 = vsub.s32 0, %v291
    %v293 = vrot.slane %v288, %v292
    %v294 = vlaneseq
    %v295 = vshrl.u32 %v294, 7
    %v296 = vsub.s32 1, %v295
    %v297 = vrot.slane %v288, %v296
    %v298 = vlaneseq
    %v299 = vshrl.u32 %v298, 7
    %v300 = vsub.s32 2, %v299
    %v301 = vrot.slane %v288, %v300
    %v302 = vlaneseq
    %v303 = vshrl.u32 %v302, 7
    %v304 = vsub.s32 3, %v303
    %v305 = vrot.slane %v288, %v304
    %v306 = vcombine.low %v293, %v297
    %v307 = vcombine.low %v301, %v305
    %v309 = vunpack.c.l.s4 1966171168
    %v310 = vunpack.c.0.s8 %v309
    %v311 = vlaneseq
    %v312 = vshrl.u32 %v311, 7
    %v313 = vsub.s32 %v310, %v312
    %v314 = vrot.slane %v306, %v313
    %v316 = vunpack.c.l.s4 1966171168
    %v317 = vunpack.c.0.s8 %v316
    %v318 = vlaneseq
    %v319 = vshrl.u32 %v318, 7
    %v320 = vsub.s32 %v317, %v319
    %v321 = vrot.slane %v307, %v320
    %v322 = vcombine.low %v314, %v321
    %v324 = vunpack.c.l.s4 1966171168
    %v325 = vunpack.c.0.s8 %v324
    %v326 = vlaneseq
    %v327 = vshrl.u32 %v326, 7
    %v328 = vsub.s32 %v325, %v327
    %v329 = vrot.slane %v322, %v328
    %330 = vset.pattern.permute.xlu0 0
    %331 = vperm.xlu0 %330, %v329
    %v332 = vpop.permute.xlu0 %331
    %v333 = vlaneseq
    %v334 = vand.u32 %v333, 127
    %v335 = vlaneseq
    %v336 = vshrl.u32 %v335, 7
    %v337 = vsub.s32 %v334, %v336
    %v338 = vrot.slane %v332, %v337
    %v340 = vunpack.c.l.s4 1966171168
    %v341 = vunpack.c.0.s8 %v340
    %v342 = vlaneseq
    %v343 = vshrl.u32 %v342, 7
    %v344 = vsub.s32 %v341, %v343
    %v345 = vrot.slane %v338, %v344
    %v347 = vunpack.c.l.s4 1966171168
    %v348 = vunpack.c.0.s8 %v347
    %v349 = vlaneseq
    %v350 = vshrl.u32 %v349, 7
    %v351 = vsub.s32 %v348, %v350
    %v352 = vrot.slane %v345, %v351
    %v354 = vadd.f32 %v62, %v352
    %vm355 = vcmask 24576
    %356 = vst.msk [vmem:[#allocation2] sm:$0x1] %vm355, %v354
    %v357 = vld [vmem:[#allocation3] sm:$0x1]
    %v358 = vmul.f32 %v30, %v30
    %v359 = vmul.f32 %v31, %v31
    %v360 = vmul.f32 %v32, %v32
    %v361 = vmul.f32 %v33, %v33
    %v362 = vmul.f32 %v34, %v34
    %v363 = vmul.f32 %v35, %v35
    %v364 = vmul.f32 %v36, %v36
    %v365 = vmul.f32 %v37, %v37
    %v366 = vmul.f32 %v38, %v38
    %v367 = vmul.f32 %v39, %v39
    %v368 = vmul.f32 %v40, %v40
    %v369 = vmul.f32 %v41, %v41
    %v370 = vmul.f32 %v42, %v42
    %v371 = vmul.f32 %v43, %v43
    %v372 = vmul.f32 %v44, %v44
    %v373 = vmul.f32 %v45, %v45
    %v374 = vmul.f32 %v46, %v46
    %v375 = vmul.f32 %v47, %v47
    %v376 = vmul.f32 %v48, %v48
    %v377 = vmul.f32 %v49, %v49
    %v378 = vmul.f32 %v50, %v50
    %v379 = vmul.f32 %v51, %v51
    %v380 = vmul.f32 %v52, %v52
    %v381 = vmul.f32 %v53, %v53
    %v382 = vmul.f32 %v54, %v54
    %v383 = vmul.f32 %v55, %v55
    %v384 = vmul.f32 %v56, %v56
    %v385 = vmul.f32 %v57, %v57
    %v386 = vmul.f32 %v58, %v58
    %v387 = vmul.f32 %v59, %v59
    %v388 = vmul.f32 %v60, %v60
    %v389 = vmul.f32 %v61, %v61
    %v422 = vcombine.high %v358, %v358
    %v423 = vcombine.high %v359, %v359
    %v424 = vcombine.high %v360, %v360
    %v425 = vcombine.high %v361, %v361
    %v426 = vcombine.high %v362, %v362
    %v427 = vcombine.high %v363, %v363
    %v428 = vcombine.high %v364, %v364
    %v429 = vcombine.high %v365, %v365
    %v430 = vcombine.high %v366, %v366
    %v431 = vcombine.high %v367, %v367
    %v432 = vcombine.high %v368, %v368
    %v433 = vcombine.high %v369, %v369
    %v434 = vcombine.high %v370, %v370
    %v435 = vcombine.high %v371, %v371
    %v436 = vcombine.high %v372, %v372
    %v437 = vcombine.high %v373, %v373
    %v438 = vcombine.high %v374, %v374
    %v439 = vcombine.high %v375, %v375
    %v440 = vcombine.high %v376, %v376
    %v441 = vcombine.high %v377, %v377
    %v442 = vcombine.high %v378, %v378
    %v443 = vcombine.high %v379, %v379
    %v444 = vcombine.high %v380, %v380
    %v445 = vcombine.high %v381, %v381
    %v446 = vcombine.high %v382, %v382
    %v447 = vcombine.high %v383, %v383
    %v448 = vcombine.high %v384, %v384
    %v449 = vcombine.high %v385, %v385
    %v450 = vcombine.high %v386, %v386
    %v451 = vcombine.high %v387, %v387
    %v452 = vcombine.high %v388, %v388
    %v453 = vcombine.high %v389, %v389
    %v486 = vsel %vm159, %v358, 0.0
    %v487 = vsel %vm159, %v422, 0.0
    %v488 = vadd.f32 %v486, %v487
    %v489 = vsel %vm159, %v359, 0.0
    %v490 = vadd.f32 %v488, %v489
    %v491 = vsel %vm159, %v423, 0.0
    %v492 = vadd.f32 %v490, %v491
    %v493 = vsel %vm159, %v360, 0.0
    %v494 = vadd.f32 %v492, %v493
    %v495 = vsel %vm159, %v424, 0.0
    %v496 = vadd.f32 %v494, %v495
    %v497 = vsel %vm159, %v361, 0.0
    %v498 = vadd.f32 %v496, %v497
    %v499 = vsel %vm159, %v425, 0.0
    %v500 = vadd.f32 %v498, %v499
    %v501 = vsel %vm159, %v362, 0.0
    %v502 = vadd.f32 %v500, %v501
    %v503 = vsel %vm159, %v426, 0.0
    %v504 = vadd.f32 %v502, %v503
    %v505 = vsel %vm159, %v363, 0.0
    %v506 = vadd.f32 %v504, %v505
    %v507 = vsel %vm159, %v427, 0.0
    %v508 = vadd.f32 %v506, %v507
    %v509 = vsel %vm159, %v364, 0.0
    %v510 = vadd.f32 %v508, %v509
    %v511 = vsel %vm159, %v428, 0.0
    %v512 = vadd.f32 %v510, %v511
    %v513 = vsel %vm159, %v365, 0.0
    %v514 = vadd.f32 %v512, %v513
    %v515 = vsel %vm159, %v429, 0.0
    %v516 = vadd.f32 %v514, %v515
    %v517 = vsel %vm159, %v366, 0.0
    %v518 = vadd.f32 %v516, %v517
    %v519 = vsel %vm159, %v430, 0.0
    %v520 = vadd.f32 %v518, %v519
    %v521 = vsel %vm159, %v367, 0.0
    %v522 = vadd.f32 %v520, %v521
    %v523 = vsel %vm159, %v431, 0.0
    %v524 = vadd.f32 %v522, %v523
    %v525 = vsel %vm159, %v368, 0.0
    %v526 = vadd.f32 %v524, %v525
    %v527 = vsel %vm159, %v432, 0.0
    %v528 = vadd.f32 %v526, %v527
    %v529 = vsel %vm159, %v369, 0.0
    %v530 = vadd.f32 %v528, %v529
    %v531 = vsel %vm159, %v433, 0.0
    %v532 = vadd.f32 %v530, %v531
    %v533 = vsel %vm159, %v370, 0.0
    %v534 = vadd.f32 %v532, %v533
    %v535 = vsel %vm159, %v434, 0.0
    %v536 = vadd.f32 %v534, %v535
    %v537 = vsel %vm159, %v371, 0.0
    %v538 = vadd.f32 %v536, %v537
    %v539 = vsel %vm159, %v435, 0.0
    %v540 = vadd.f32 %v538, %v539
    %v541 = vsel %vm159, %v372, 0.0
    %v542 = vadd.f32 %v540, %v541
    %v543 = vsel %vm159, %v436, 0.0
    %v544 = vadd.f32 %v542, %v543
    %v545 = vsel %vm159, %v373, 0.0
    %v546 = vadd.f32 %v544, %v545
    %v547 = vsel %vm159, %v437, 0.0
    %v548 = vadd.f32 %v546, %v547
    %v549 = vsel %vm159, %v374, 0.0
    %v550 = vadd.f32 %v548, %v549
    %v551 = vsel %vm159, %v438, 0.0
    %v552 = vadd.f32 %v550, %v551
    %v553 = vsel %vm159, %v375, 0.0
    %v554 = vadd.f32 %v552, %v553
    %v555 = vsel %vm159, %v439, 0.0
    %v556 = vadd.f32 %v554, %v555
    %v557 = vsel %vm159, %v376, 0.0
    %v558 = vadd.f32 %v556, %v557
    %v559 = vsel %vm159, %v440, 0.0
    %v560 = vadd.f32 %v558, %v559
    %v561 = vsel %vm159, %v377, 0.0
    %v562 = vadd.f32 %v560, %v561
    %v563 = vsel %vm159, %v441, 0.0
    %v564 = vadd.f32 %v562, %v563
    %v565 = vsel %vm159, %v378, 0.0
    %v566 = vadd.f32 %v564, %v565
    %v567 = vsel %vm159, %v442, 0.0
    %v568 = vadd.f32 %v566, %v567
    %v569 = vsel %vm159, %v379, 0.0
    %v570 = vadd.f32 %v568, %v569
    %v571 = vsel %vm159, %v443, 0.0
    %v572 = vadd.f32 %v570, %v571
    %v573 = vsel %vm159, %v380, 0.0
    %v574 = vadd.f32 %v572, %v573
    %v575 = vsel %vm159, %v444, 0.0
    %v576 = vadd.f32 %v574, %v575
    %v577 = vsel %vm159, %v381, 0.0
    %v578 = vadd.f32 %v576, %v577
    %v579 = vsel %vm159, %v445, 0.0
    %v580 = vadd.f32 %v578, %v579
    %v581 = vsel %vm159, %v382, 0.0
    %v582 = vadd.f32 %v580, %v581
    %v583 = vsel %vm159, %v446, 0.0
    %v584 = vadd.f32 %v582, %v583
    %v585 = vsel %vm159, %v383, 0.0
    %v586 = vadd.f32 %v584, %v585
    %v587 = vsel %vm159, %v447, 0.0
    %v588 = vadd.f32 %v586, %v587
    %v589 = vsel %vm159, %v384, 0.0
    %v590 = vadd.f32 %v588, %v589
    %v591 = vsel %vm159, %v448, 0.0
    %v592 = vadd.f32 %v590, %v591
    %v593 = vsel %vm159, %v385, 0.0
    %v594 = vadd.f32 %v592, %v593
    %v595 = vsel %vm159, %v449, 0.0
    %v596 = vadd.f32 %v594, %v595
    %v597 = vsel %vm159, %v386, 0.0
    %v598 = vadd.f32 %v596, %v597
    %v599 = vsel %vm159, %v450, 0.0
    %v600 = vadd.f32 %v598, %v599
    %v601 = vsel %vm159, %v387, 0.0
    %v602 = vadd.f32 %v600, %v601
    %v603 = vsel %vm159, %v451, 0.0
    %v604 = vadd.f32 %v602, %v603
    %v605 = vsel %vm159, %v388, 0.0
    %v606 = vadd.f32 %v604, %v605
    %v607 = vsel %vm159, %v452, 0.0
    %v608 = vadd.f32 %v606, %v607
    %v609 = vsel %vm159, %v389, 0.0
    %v610 = vadd.f32 %v608, %v609
    %v611 = vsel %vm159, %v453, 0.0
    %v612 = vadd.f32 %v610, %v611
    %613 = vadd.xlane.f32.xlu0 %v612
    %v614 = vpop.xlane.xlu0 %613
    %v616 = vlaneseq
    %v617 = vshrl.u32 %v616, 7
    %v618 = vsub.s32 0, %v617
    %v619 = vrot.slane %v614, %v618
    %v620 = vlaneseq
    %v621 = vshrl.u32 %v620, 7
    %v622 = vsub.s32 1, %v621
    %v623 = vrot.slane %v614, %v622
    %v624 = vlaneseq
    %v625 = vshrl.u32 %v624, 7
    %v626 = vsub.s32 2, %v625
    %v627 = vrot.slane %v614, %v626
    %v628 = vlaneseq
    %v629 = vshrl.u32 %v628, 7
    %v630 = vsub.s32 3, %v629
    %v631 = vrot.slane %v614, %v630
    %v632 = vcombine.low %v619, %v623
    %v633 = vcombine.low %v627, %v631
    %v635 = vunpack.c.l.s4 1966171168
    %v636 = vunpack.c.0.s8 %v635
    %v637 = vlaneseq
    %v638 = vshrl.u32 %v637, 7
    %v639 = vsub.s32 %v636, %v638
    %v640 = vrot.slane %v632, %v639
    %v642 = vunpack.c.l.s4 1966171168
    %v643 = vunpack.c.0.s8 %v642
    %v644 = vlaneseq
    %v645 = vshrl.u32 %v644, 7
    %v646 = vsub.s32 %v643, %v645
    %v647 = vrot.slane %v633, %v646
    %v648 = vcombine.low %v640, %v647
    %v650 = vunpack.c.l.s4 1966171168
    %v651 = vunpack.c.0.s8 %v650
    %v652 = vlaneseq
    %v653 = vshrl.u32 %v652, 7
    %v654 = vsub.s32 %v651, %v653
    %v655 = vrot.slane %v648, %v654
    %656 = vset.pattern.permute.xlu0 0
    %657 = vperm.xlu0 %656, %v655
    %v658 = vpop.permute.xlu0 %657
    %v659 = vlaneseq
    %v660 = vshrl.u32 %v659, 7
    %v661 = vsub.s32 %v334, %v660
    %v662 = vrot.slane %v658, %v661
    %v664 = vunpack.c.l.s4 1966171168
    %v665 = vunpack.c.0.s8 %v664
    %v666 = vlaneseq
    %v667 = vshrl.u32 %v666, 7
    %v668 = vsub.s32 %v665, %v667
    %v669 = vrot.slane %v662, %v668
    %v671 = vunpack.c.l.s4 1966171168
    %v672 = vunpack.c.0.s8 %v671
    %v673 = vlaneseq
    %v674 = vshrl.u32 %v673, 7
    %v675 = vsub.s32 %v672, %v674
    %v676 = vrot.slane %v669, %v675
    %v678 = vadd.f32 %v357, %v676
    %679 = vst.msk [vmem:[#allocation3] sm:$0x1] %vm355, %v678
    // Predicated region
    $region14: #{tpu_custom_call.1} parent=1 // pred_check
      %p680 = pneg %p23
    $region15: #{tpu_custom_call.1} parent=1 // pred_check_branch
      %682 = sbr.rel (%p680) target = $region17
    $region16: #{tpu_custom_call.1} parent=1 // pred_region
      %v683 = vld [vmem:[#allocation2] sm:$0x1]
      %v684 = vmul.f32 %v683, 0.00012207031
      %v685 = vld [vmem:[#allocation3] sm:$0x1]
      %v686 = vmul.f32 %v685, 0.00012207031
      %v687 = vmul.f32 %v684, %v684
      %v688 = vsub.f32 %v686, %v687
      %v689 = vmax.f32 %v688, 1e-05
      %v690 = vrsqrt.pop %v689
      %v691 = vmul.f32 %v689, %v690
      %vm692 = vcmp.eq.f32.partialorder %v689, inf
      %v693 = vsel %vm692, %v689, %v691
      %vm694 = vcmp.eq.f32.partialorder %v689, 0.0
      %v695 = vand.u32 %v689, 2147483648
      %v696 = vsel %vm694, %v695, %v693
      %697 = vst.msk [vmem:[#allocation7] sm:$0x1] %vm355, %v696
    $region17: #{tpu_custom_call.1} parent=1 // pred_fallthru
      _
    // Predicated region
    $region18: #{tpu_custom_call.1} parent=1 // pred_check
      _
    $region19: #{tpu_custom_call.1} parent=1 // pred_check_branch
      %699 = sbr.rel (0) target = $region21
    $region20: #{tpu_custom_call.1} parent=1 // pred_region
      %s701 = ssub.s32 16, 16
      %702 = vsyncadd [#allocation6], %s701
      %s704 = sshll.u32 [#allocation7], 4
      %s705 = int_to_ptr.vmem [resolvable:$true] %s704
      %707 = dma.vmem_to_hbm [thread:$0]  %s705, 16, %s1, [#allocation6]
    $region21: #{tpu_custom_call.1} parent=1 // pred_fallthru
      _
    // Predicated region
    $region22: #{tpu_custom_call.1} parent=1 // pred_check
      _
    $region23: #{tpu_custom_call.1} parent=1 // pred_check_branch
      %709 = sbr.rel (0) target = $region25
    $region24: #{tpu_custom_call.1} parent=1 // pred_region
      %710 = dma.done [#allocation6], 16
    $region25: #{tpu_custom_call.1} parent=1 // pred_fallthru
      _
    %711 = vsyncpa [#allocation5], 1
    %712 = vsyncpa [#allocation6], 1

</llo_original>
